<compile_context>
chip_gen: v7x
topology: tpu7x:2x2x1
jax: 0.10.0
libtpu: 0.0.40
codegen_flags: <defaults>
</compile_context>

<pallas_src>
import functools

import jax
import jax.numpy as jnp
from jax.experimental import pallas as pl
from jax.experimental.pallas import tpu as pltpu

Q = 0.6
MAX_TILE_L = 32768      # lanes per block; (8, 32768) f32 = 1 MiB per block
NUM_CORES = 2           # leading "parallel" grid axis (megacore / dual-TC)


def _tsallis_sum_kernel(x_ref, o_ref, acc_ref, *, lanes, tile_l, nk, need_mask):
    """Per-core running sum of x^Q, lane-reduced block by block.

    x_ref:   (rows, tile_l) f32 input block
    o_ref:   (1, rows, 1)   f32 per-core partial-sum output block
    acc_ref: (rows, 1)      f32 VMEM accumulator (single vreg)
    """
    p = pl.program_id(0)
    k = pl.program_id(1)

    @pl.when(k == 0)
    def _():
        acc_ref[...] = jnp.zeros_like(acc_ref)

    x = x_ref[...]
    if need_mask:
        # Statically-specialized masking: zeroes (a) garbage lanes of the
        # ragged last block and (b) the clamped duplicate block a core gets
        # when the block count does not split evenly across cores.
        b = p * nk + k                          # logical lane-block index
        valid = lanes - b * tile_l              # in-range lanes for this block
        lane = jax.lax.broadcasted_iota(jnp.int32, x.shape, 1)
        x = jnp.where(lane < valid, x, 0.0)

    # x^q lowers to exp(q*log(x)); exact zeros (masked entries) give
    # exp(-inf) == 0, and softmax probabilities are >= 0, so no NaNs arise.
    pw = jnp.power(x, Q)
    # Immediate lane reduction -> (rows, 1): VALU/XLU work that hides under the
    # EUP/HBM bottleneck; keeps the accumulator at one vreg.
    acc_ref[...] += jnp.sum(pw, axis=1, keepdims=True)

    @pl.when(k == nk - 1)
    def _():
        o_ref[...] = acc_ref[...][None]         # (1, rows, 1) per-core partials


def tsallis_loss(predict):
    """predict: (n, c, h, w) array of non-negative class probabilities."""
    n, c, h, w = predict.shape
    loc = n * h * w                     # batchsize * h * w (torch denominator)
    total = n * c * h * w

    if predict.dtype != jnp.float32:
        # TODO(synk): for bf16 producers, stream bf16 blocks and upcast inside
        # the kernel to halve HBM traffic instead of paying this copy.
        predict = predict.astype(jnp.float32)

    # Free (bitcast) reshape: pick the largest row count in {8,4,2,1} dividing
    # the element count, so no pad / slice copy is ever materialized.
    rows = next(r for r in (8, 4, 2, 1) if total % r == 0)
    lanes = total // rows
    slab = predict.reshape(rows, lanes)

    # Lane tiling: full row if it fits, else 1 MiB lane-dense blocks.
    tile_l = lanes if lanes <= MAX_TILE_L else MAX_TILE_L
    nblk = pl.cdiv(lanes, tile_l)               # lane blocks overall
    nk = pl.cdiv(nblk, NUM_CORES)               # lane blocks per core
    need_mask = (lanes % tile_l != 0) or (nk * NUM_CORES != nblk)

    def in_idx(p, k):
        # Clamp the (fully-masked) duplicate tail blocks so the DMA stays
        # in bounds.
        return (0, jnp.minimum(p * nk + k, nblk - 1))

    kernel = functools.partial(
        _tsallis_sum_kernel,
        lanes=lanes, tile_l=tile_l, nk=nk, need_mask=need_mask)

    partials = pl.pallas_call(
        kernel,
        out_shape=jax.ShapeDtypeStruct((NUM_CORES, rows, 1), jnp.float32),
        grid_spec=pltpu.PrefetchScalarGridSpec(
            num_scalar_prefetch=0,
            grid=(NUM_CORES, nk),
            in_specs=[pl.BlockSpec((rows, tile_l), in_idx)],
            out_specs=pl.BlockSpec((1, rows, 1), lambda p, k: (p, 0, 0)),
            scratch_shapes=[pltpu.VMEM((rows, 1), jnp.float32)],
        ),
        compiler_params=pltpu.CompilerParams(
            dimension_semantics=("parallel", "arbitrary"),
        ),
    )(slab)

    s = jnp.sum(partials)                       # combine per-core partial sums
    # loss = (L - sum_all x^q) / ((q - 1) * L)
    return (loc - s) / ((Q - 1.0) * loc)


def tsallis_ref(predict):
    """Pure-JAX reference of the torch forward."""
    n, c, h, w = predict.shape
    t = 1.0 - jnp.sum(jnp.power(predict, Q), axis=1)
    t = t / (Q - 1.0)
    return jnp.sum(t) / (n * h * w)


if __name__ == "__main__":
    key = jax.random.PRNGKey(0)
    shapes = [
        (2, 4, 16, 16),     # small canonical shape
        (2, 3, 33, 33),     # element count not divisible by 8 -> rows=2 path
        (2, 8, 192, 192),   # multi lane-block per core + ragged tail + clamp
        (2, 8, 128, 256),   # exactly divisible -> mask-free fast path
    ]
    for shp in shapes:
        key, sub = jax.random.split(key)
        logits = jax.random.normal(sub, shp, dtype=jnp.float32)
        # predict is a per-pixel class distribution (softmax over channel).
        predict = jax.nn.softmax(logits, axis=1)

        out = jax.block_until_ready(tsallis_loss(predict))
        ref = tsallis_ref(predict)
        assert jnp.allclose(out, ref, rtol=1e-4, atol=1e-6), (shp, out, ref)

    print("KERNEL_OK")
</pallas_src>

<mosaic_0001>
module attributes {stable_mosaic.version = 11 : i64} {
  func.func @_tsallis_sum_kernel(%arg0: i32, %arg1: i32, %arg2: memref<8x256xf32, #tpu.memory_space<vmem>>, %arg3: memref<1x8x1xf32, #tpu.memory_space<vmem>>, %arg4: memref<8x1xf32, #tpu.memory_space<vmem>>) attributes {dimension_semantics = [#tpu.dimension_semantics<parallel>, #tpu.dimension_semantics<arbitrary>], iteration_bounds = array<i64: 2, 1>, scalar_prefetch = 0 : i64, scratch_operands = 1 : i64, tpu.core_type = #tpu.core_type<tc>, window_params = [{transform_indices = @transform_0, window_bounds = array<i64: 8, 256>}, {transform_indices = @transform_1, window_bounds = array<i64: 1, 8, 1>}]} {
    %c0_i32 = arith.constant 0 : i32
    %0 = arith.cmpi eq, %arg1, %c0_i32 : i32
    %1 = arith.extui %0 : i1 to i32
    %c0_i32_0 = arith.constant 0 : i32
    %2 = arith.cmpi ne, %1, %c0_i32_0 : i32
    scf.if %2 {
      %cst_11 = arith.constant 0.000000e+00 : f32
      %23 = vector.broadcast %cst_11 : f32 to vector<8x1xf32>
      %c0_12 = arith.constant 0 : index
      %c0_13 = arith.constant 0 : index
      %24 = vector.load %arg4[%c0_12, %c0_13] : memref<8x1xf32, #tpu.memory_space<vmem>>, vector<8x1xf32>
      tpu.vector_store %arg4[%c0_12, %c0_13], %23 {strides = array<i32>} : memref<8x1xf32, #tpu.memory_space<vmem>>, vector<8x1xf32>,
    } else {
    }
    %c0 = arith.constant 0 : index
    %c0_1 = arith.constant 0 : index
    %3 = vector.load %arg2[%c0, %c0_1] : memref<8x256xf32, #tpu.memory_space<vmem>>, vector<8x256xf32>
    %c1_i32 = arith.constant 1 : i32
    %4 = arith.muli %arg0, %c1_i32 : i32
    %5 = arith.addi %4, %arg1 : i32
    %c256_i32 = arith.constant 256 : i32
    %6 = arith.muli %5, %c256_i32 : i32
    %c256_i32_2 = arith.constant 256 : i32
    %7 = arith.subi %c256_i32_2, %6 : i32
    %8 = tpu.iota {dimensions = array<i32: 1>} : vector<8x256xi32>
    %9 = vector.broadcast %7 : i32 to vector<8x256xi32>
    %10 = arith.cmpi slt, %8, %9 : vector<8x256xi32>
    %cst = arith.constant 0.000000e+00 : f32
    %11 = vector.broadcast %cst : f32 to vector<8x256xf32>
    %12 = arith.select %10, %3, %11 : vector<8x256xi1>, vector<8x256xf32>
    %cst_3 = arith.constant 6.000000e-01 : f32
    %13 = vector.broadcast %cst_3 : f32 to vector<8x256xf32>
    %14 = math.powf %12, %13 : vector<8x256xf32>
    %c0_4 = arith.constant 0 : index
    %c0_5 = arith.constant 0 : index
    %15 = vector.load %arg4[%c0_4, %c0_5] : memref<8x1xf32, #tpu.memory_space<vmem>>, vector<8x1xf32>
    %cst_6 = arith.constant dense<0.000000e+00> : vector<8xf32>
    %16 = vector.multi_reduction <add>, %14, %cst_6 [1] : vector<8x256xf32> to vector<8xf32>
    %17 = vector.shape_cast %16 : vector<8xf32> to vector<8x1xf32>
    %18 = arith.addf %15, %17 : vector<8x1xf32>
    %c0_7 = arith.constant 0 : index
    %c0_8 = arith.constant 0 : index
    %19 = vector.load %arg4[%c0_7, %c0_8] : memref<8x1xf32, #tpu.memory_space<vmem>>, vector<8x1xf32>
    tpu.vector_store %arg4[%c0_7, %c0_8], %18 {strides = array<i32>} : memref<8x1xf32, #tpu.memory_space<vmem>>, vector<8x1xf32>,
    %c0_i32_9 = arith.constant 0 : i32
    %20 = arith.cmpi eq, %arg1, %c0_i32_9 : i32
    %21 = arith.extui %20 : i1 to i32
    %c0_i32_10 = arith.constant 0 : i32
    %22 = arith.cmpi ne, %21, %c0_i32_10 : i32
    scf.if %22 {
      %c0_11 = arith.constant 0 : index
      %c0_12 = arith.constant 0 : index
      %23 = vector.load %arg4[%c0_11, %c0_12] : memref<8x1xf32, #tpu.memory_space<vmem>>, vector<8x1xf32>
      %24 = vector.shape_cast %23 : vector<8x1xf32> to vector<1x8x1xf32>
      %c0_13 = arith.constant 0 : index
      %c0_14 = arith.constant 0 : index
      %c0_15 = arith.constant 0 : index
      %25 = vector.load %arg3[%c0_13, %c0_14, %c0_15] : memref<1x8x1xf32, #tpu.memory_space<vmem>>, vector<1x8x1xf32>
      tpu.vector_store %arg3[%c0_13, %c0_14, %c0_15], %24 {strides = array<i32>} : memref<1x8x1xf32, #tpu.memory_space<vmem>>, vector<1x8x1xf32>,
    } else {
    }
    return
  }
  func.func @transform_0(%arg0: i32, %arg1: i32) -> (i32, i32) {
    %c1_i32 = arith.constant 1 : i32
    %0 = arith.muli %arg0, %c1_i32 : i32
    %1 = arith.addi %0, %arg1 : i32
    %c0_i32 = arith.constant 0 : i32
    %2 = arith.minsi %1, %c0_i32 : i32
    %c0_i32_0 = arith.constant 0 : i32
    %c0_i32_1 = arith.constant 0 : i32
    return %c0_i32_0, %2 : i32, i32
  }
  func.func @transform_1(%arg0: i32, %arg1: i32) -> (i32, i32, i32) {
    %c0_i32 = arith.constant 0 : i32
    %c0_i32_0 = arith.constant 0 : i32
    %c0_i32_1 = arith.constant 0 : i32
    return %arg0, %c0_i32, %c0_i32_0 : i32, i32, i32
  }
}

</mosaic_0001>

<llo_original>
// kernel: tpu_custom_call.1
$region0: #{tpu_custom_call.1}
  #allocation0 [shape = 'u32[]', space=smem, size = 0x4, offset = 0x4, fixed_abs, tag = 'smem constant byte address 0x4 - core index']
  #allocation1 [shape = 'u32[144,128]{1,0:T(1,128)}', space=vmem, size = 0x12000, scoped, tag = 'internal scratch']
  #allocation2 [shape = 'f32[8,1]{1,0:T(8,128)}', space=vmem, size = 0x1000, scoped, tag = 'scratch operand']
  %s0 = inlined_call_operand.hbm [shape: f32[8,256], index: 0, kind: input, shape index: {}]
  %s1 = inlined_call_operand.vmem [shape: f32[2,8,1], index: 1, kind: output, shape index: {}]
  %s2 = sld [smem:[#allocation0]]
  $region49: #{tpu_custom_call.1} parent=0
    _
  %s4 = ssub.s32 1, %s2
  %s5 = scalar_select 0, %s4, %s2
  $region1: #{tpu_custom_call.1} parent=0
    #allocation3 [shape = 'u8[16384]{0}', space=vmem, size = 0x4000, scoped, tag = 'input window, operand 0']
    #allocation4 [shape = 's32[2]{0}', space=sflag, size = 0x8, scoped, tag = 'scoped memory for tpu_custom_call.1']
    %6 = vsyncpa [#allocation4], 0
    %s7 = scalar_lea.sflag [#allocation4], 1
    %8 = vsyncpa %s7, 0
    loop: start=0, step=1, limit=4
    $region2: #{tpu_custom_call.1} parent=1 // loop_pre_header
      _
    $region3: #{tpu_custom_call.1} parent=1 // loop_header
      %s10 = sphi 0, %s14
      %p11 = scmp.ge.s32.totalorder %s10, 4
      %s17 = sphi 0, %s29
      %s18 = sphi 0, %s25
      %s19 = sphi 0, %s17
      %s20 = sphi 0, %s18
      %s21 = sphi 0, %s19
      %s22 = sphi 0, %s20
      %s38 = sphi 0, %s40
      %s41 = sphi 0, %s38
      %s42 = sphi 0, %s41
      %s58 = sphi 0, %s42
      %s64 = sphi 0, %s66
      %s67 = sphi 0, %s64
      %s68 = sphi 0, %s67
      %s84 = sphi 0, %s68
    $region4: #{tpu_custom_call.1} parent=1 // loop_header_branch
      %13 = sbr.rel (%p11) target = $region8
    $region5: #{tpu_custom_call.1} parent=1 // loop_body
      %s15 = ssub.s32 %s10, 1
      %s16 = ssub.s32 %s10, 2
      %s23 = sadd.s32 1, %s18
      %p24 = scmp.ge.s32.totalorder %s23, 1
      %s25 = scalar_select %p24, 0, %s23
      %s26 = sadd.s32 1, %s17
      %s27 = scalar_select %p24, %s26, %s17
      %p28 = scmp.ge.s32.totalorder %s27, 2
      %s29 = scalar_select %p28, 0, %s27
      %s30 = sadd.s32 %s17, %s18
      %p31 = scmp.lt.s32.totalorder %s30, 0
      %s32 = scalar_select %p31, %s30, 0
      %s33 = sadd.s32 %s29, %s25
      %p34 = scmp.lt.s32.totalorder %s33, 0
      %s35 = scalar_select %p34, %s33, 0
      %s36 = ssub.s32 %s32, %s35
      %p37 = scmp.eq.s32.totalorder %s36, 0
      %s39 = sadd.s32 %s38, 1
      %s40 = scalar_select %p37, %s38, %s39
      %p43 = pneg %p37
      %p44 = scmp.eq.s32.totalorder %s10, 1
      %p45 = por %p43, %p44
      %p46 = scmp.ne.s32.totalorder %s38, %s41
      %p47 = scmp.eq.s32.totalorder %s10, 0
      %p48 = por %p46, %p47
      %p49 = scmp.ne.s32.totalorder %s38, %s41
      %p50 = scmp.eq.s32.totalorder %s15, 1
      %p51 = por %p49, %p50
      %p52 = scmp.ne.s32.totalorder %s41, %s42
      %p53 = scmp.eq.s32.totalorder %s15, 0
      %p54 = por %p52, %p53
      %p55 = scmp.ne.s32.totalorder %s41, %s42
      %p56 = scmp.eq.s32.totalorder %s16, 1
      %p57 = por %p55, %p56
      %p59 = scmp.ne.s32.totalorder %s42, %s58
      %p60 = scmp.eq.s32.totalorder %s16, 0
      %p61 = por %p59, %p60
      %s62 = ssub.s32 %s17, %s29
      %p63 = scmp.eq.s32.totalorder %s62, 0
      %s65 = sadd.s32 %s64, 1
      %s66 = scalar_select %p63, %s64, %s65
      %p69 = pneg %p63
      %p70 = scmp.eq.s32.totalorder %s10, 1
      %p71 = por %p69, %p70
      %p72 = scmp.ne.s32.totalorder %s64, %s67
      %p73 = scmp.eq.s32.totalorder %s10, 0
      %p74 = por %p72, %p73
      %p75 = scmp.ne.s32.totalorder %s64, %s67
      %p76 = scmp.eq.s32.totalorder %s15, 1
      %p77 = por %p75, %p76
      %p78 = scmp.ne.s32.totalorder %s67, %s68
      %p79 = scmp.eq.s32.totalorder %s15, 0
      %p80 = por %p78, %p79
      %p81 = scmp.ne.s32.totalorder %s67, %s68
      %p82 = scmp.eq.s32.totalorder %s16, 1
      %p83 = por %p81, %p82
      %p85 = scmp.ne.s32.totalorder %s68, %s84
      %p86 = scmp.eq.s32.totalorder %s16, 0
      %p87 = por %p85, %p86
      %p88 = scmp.le.s32.totalorder 1, %s10
      %p89 = scmp.lt.s32.totalorder %s10, 3
      %p90 = pnand %p88, %p89
      %p91 = pneg %p90
      // Predicated region
      $region9: #{tpu_custom_call.1} parent=5 // pred_check
        _
      $region10: #{tpu_custom_call.1} parent=5 // pred_check_branch
        %93 = sbr.rel (%p90) target = $region12
      $region11: #{tpu_custom_call.1} parent=5 // pred_region
        %s94 = ssub.s32 %s10, 1
      $region12: #{tpu_custom_call.1} parent=5 // pred_fallthru
        _
      %p95 = scmp.lt.s32.totalorder %s10, 2
      // Predicated region
      $region13: #{tpu_custom_call.1} parent=5 // pred_check
        %p96 = pneg %p95
      $region14: #{tpu_custom_call.1} parent=5 // pred_check_branch
        %98 = sbr.rel (%p96) target = $region16
      $region15: #{tpu_custom_call.1} parent=5 // pred_region
        // Predicated region
        $region17: #{tpu_custom_call.1} parent=15 // pred_check
          %p99 = pneg %p48
        $region18: #{tpu_custom_call.1} parent=15 // pred_check_branch
          %101 = sbr.rel (%p99) target = $region20
        $region19: #{tpu_custom_call.1} parent=15 // pred_region
          %s102 = sand.u32 %s38, 1
          %s103 = scalar_lea.sflag [#allocation4], %s102
          %s104 = sand.u32 %s38, 1
          %s105 = smul.addr %s104, 16
          %s106 = scalar_lea.vmem [#allocation3], %s105
          %s107 = sadd.s32 %s17, %s18
          %p108 = scmp.lt.s32.totalorder %s107, 0
          %s109 = scalar_select %p108, %s107, 0
          %s110 = smul.u32 2, %s109
          %s112 = ssub.s32 256, 256
          %113 = vsyncadd %s103, %s112
          %s114 = smul.addr %s110, 128
          %s115 = scalar_lea.hbm %s0, %s114
          %s117 = sshll.u32 %s106, 4
          %s118 = int_to_ptr.vmem [resolvable:$true] %s117
          %120 = dma.hbm_to_vmem [thread:$0]  %s115, 256, %s118, %s103
        $region20: #{tpu_custom_call.1} parent=15 // pred_fallthru
          _
      $region16: #{tpu_custom_call.1} parent=5 // pred_fallthru
        _
      %p121 = scmp.le.s32.totalorder 1, %s10
      %p122 = scmp.lt.s32.totalorder %s10, 3
      %p123 = pnand %p121, %p122
      %p124 = pneg %p123
      // Predicated region
      $region21: #{tpu_custom_call.1} parent=5 // pred_check
        _
      $region22: #{tpu_custom_call.1} parent=5 // pred_check_branch
        %126 = sbr.rel (%p123) target = $region24
      $region23: #{tpu_custom_call.1} parent=5 // pred_region
        %s127 = ssub.s32 %s10, 1
        %s128 = sand.u32 %s41, 1
        %s129 = scalar_lea.sflag [#allocation4], %s128
        %s130 = sand.u32 %s41, 1
        %s131 = smul.addr %s130, 16
        %s132 = scalar_lea.vmem [#allocation3], %s131
        // Predicated region
        $region25: #{tpu_custom_call.1} parent=23 // pred_check
          %p133 = pneg %p54
        $region26: #{tpu_custom_call.1} parent=23 // pred_check_branch
          %135 = sbr.rel (%p133) target = $region28
        $region27: #{tpu_custom_call.1} parent=23 // pred_region
          %136 = dma.done %s129, 256
        $region28: #{tpu_custom_call.1} parent=23 // pred_fallthru
          _
        %s137 = sand.u32 %s41, 1
        %s138 = scalar_lea.sflag [#allocation4], %s137
        %s139 = sand.u32 %s41, 1
        %s140 = smul.addr %s139, 16
        %s141 = scalar_lea.vmem [#allocation3], %s140
        %p142 = pneg %p54
        %p143 = pneg %p51
        %p144 = pneg %p80
        %p145 = pneg %p77
        %p146 = scmp.lt.s32.totalorder %s19, 1
        %s147 = scalar_select %p146, %s19, 1
        %s148 = smul.addr %s147, 8
        %s149 = scalar_lea.vmem %s1, %s148
        %s150 = sadd.s32 %s19, %s20
        %p151 = scmp.lt.s32.totalorder %s150, 0
        %s152 = scalar_select %p151, %s150, 0
        %s153 = smul.u32 2, %s152
        %p154 = scmp.lt.s32.totalorder %s19, 1
        %s155 = scalar_select %p154, %s19, 1
        %s156 = smul.addr %s155, 8
        %s157 = scalar_lea.vmem %s1, %s156
        %p158 = scmp.eq.s32.totalorder %s20, 0
        // Predicated region
        $region29: #{tpu_custom_call.1} parent=23 // pred_check
          %p159 = pneg %p158
        $region30: #{tpu_custom_call.1} parent=23 // pred_check_branch
          %161 = sbr.rel (%p159) target = $region32
        $region31: #{tpu_custom_call.1} parent=23 // pred_region
          %vm162 = vcmask 7168
          %163 = vst.msk [vmem:[#allocation2] sm:$0xff] %vm162, 0.0
        $region32: #{tpu_custom_call.1} parent=23 // pred_fallthru
          _
        %v164 = vld [vmem:[%s132] sm:$0xff]
        %v165 = vld [vmem:[%s132 + $0x8] sm:$0xff]
        %s166 = sadd.s32 %s19, %s20
        %s167 = smul.u32 %s166, 256
        %s168 = ssub.s32 256, %s167
        %v169 = vlaneseq
        %v170 = vand.u32 %v169, 127
        %v171 = vadd.s32 %v170, 128
        %v172 = vstv %s168
        %vm173 = vcmp.lt.s32.totalorder %v170, %v172
        %vm174 = vcmp.lt.s32.totalorder %v171, %v172
        %v175 = vsel %vm173, %v164, 0.0
        %v176 = vsel %vm174, %v165, 0.0
        %v177 = vpow.f32 %v175, 0.6
        %v178 = vpow.f32 %v176, 0.6
        %v179 = vld [vmem:[#allocation2] sm:$0xff]
        %v180 = vadd.f32 %v177, %v178
        %181 = vadd.xlane.f32.xlu0 %v180
        %v182 = vpop.xlane.xlu0 %181
        %v183 = vadd.f32 %v179, %v182
        %vm184 = vcmask 7168
        %185 = vst.msk [vmem:[#allocation2] sm:$0xff] %vm184, %v183
        // Predicated region
        $region33: #{tpu_custom_call.1} parent=23 // pred_check
          %p186 = pneg %p158
        $region34: #{tpu_custom_call.1} parent=23 // pred_check_branch
          %188 = sbr.rel (%p186) target = $region36
        $region35: #{tpu_custom_call.1} parent=23 // pred_region
          %v189 = vld [vmem:[#allocation2] sm:$0xff]
          %190 = vst.msk [vmem:[%s157] sm:$0xff] %vm184, %v189
        $region36: #{tpu_custom_call.1} parent=23 // pred_fallthru
          _
        %p191 = scmp.lt.s32.totalorder %s19, 1
        %s192 = scalar_select %p191, %s19, 1
        %s193 = smul.addr %s192, 8
        %s194 = scalar_lea.vmem %s1, %s193
        // Predicated region
        $region37: #{tpu_custom_call.1} parent=23 // pred_check
          %p195 = pneg %p77
        $region38: #{tpu_custom_call.1} parent=23 // pred_check_branch
          %197 = sbr.rel (%p195) target = $region40
        $region39: #{tpu_custom_call.1} parent=23 // pred_region
          _
        $region40: #{tpu_custom_call.1} parent=23 // pred_fallthru
          _
      $region24: #{tpu_custom_call.1} parent=5 // pred_fallthru
        _
      %p198 = scmp.le.s32.totalorder 2, %s10
      // Predicated region
      $region41: #{tpu_custom_call.1} parent=5 // pred_check
        %p199 = pneg %p198
      $region42: #{tpu_custom_call.1} parent=5 // pred_check_branch
        %201 = sbr.rel (%p199) target = $region44
      $region43: #{tpu_custom_call.1} parent=5 // pred_region
        %s202 = ssub.s32 %s10, 2
        // Predicated region
        $region45: #{tpu_custom_call.1} parent=43 // pred_check
          %p203 = pneg %p83
        $region46: #{tpu_custom_call.1} parent=43 // pred_check_branch
          %205 = sbr.rel (%p203) target = $region48
        $region47: #{tpu_custom_call.1} parent=43 // pred_region
          %p206 = scmp.lt.s32.totalorder %s21, 1
          %s207 = scalar_select %p206, %s21, 1
          %s208 = smul.addr %s207, 8
          %s209 = scalar_lea.vmem %s1, %s208
        $region48: #{tpu_custom_call.1} parent=43 // pred_fallthru
          _
      $region44: #{tpu_custom_call.1} parent=5 // pred_fallthru
        _
    $region6: #{tpu_custom_call.1} parent=1 // loop_footer
      %s14 = sadd.s32 1, %s10
    $region7: #{tpu_custom_call.1} parent=1 // loop_footer_branch
      %9 = sbr.rel target = $region3
    $region8: #{tpu_custom_call.1} parent=1 // loop_exit
      _
    %210 = vsyncpa [#allocation4], 1
    %s211 = scalar_lea.sflag [#allocation4], 1
    %212 = vsyncpa %s211, 1

</llo_original>
